<compile_context>
chip_gen: v6e
topology: v6e:2x2x1
jax: 0.10.0
libtpu: 0.0.40
codegen_flags: <defaults>
</compile_context>

<pallas_src>
import functools

import jax
import jax.numpy as jnp
from jax import lax
from jax.experimental import pallas as pl
from jax.experimental.pallas import tpu as pltpu


def _make_dice_kernel(has_weight, tile_r, d_valid, need_mask):
    """Build the kernel over grid (sample n, row-tile r).

    Refs per grid step:
      x_ref, t_ref[, w_ref] : (tile_r, 128) native-dtype slabs of sample n
      out_ref               : (2, 128) f32 per-sample per-lane accumulator
                              row 0: sum(preds * trues)   (intersection)
                              row 1: sum(preds + trues)   (psum + tsum)
    """

    def kernel(*refs):
        if has_weight:
            x_ref, t_ref, w_ref, out_ref = refs
        else:
            x_ref, t_ref, out_ref = refs
            w_ref = None

        r = pl.program_id(1)

        @pl.when(r == 0)
        def _init():
            out_ref[...] = jnp.zeros_like(out_ref)

        # Cast on load: keeps the HBM stream at the input's native width.
        x = x_ref[...].astype(jnp.float32)
        t = t_ref[...].astype(jnp.float32)

        preds = jax.nn.sigmoid(x)
        trues = t
        if has_weight:
            w = w_ref[...].astype(jnp.float32)
            preds = preds * w
            trues = trues * w

        if need_mask:
            # Kill the ragged tail: rows past the end of this sample and (if the
            # feature dim was lane-padded) the padded lanes.
            row = lax.broadcasted_iota(jnp.int32, preds.shape, 0) + r * tile_r
            lane = lax.broadcasted_iota(jnp.int32, preds.shape, 1)
            mask = (row * 128 + lane) < d_valid
            preds = jnp.where(mask, preds, 0.0)
            trues = jnp.where(mask, trues, 0.0)

        out_ref[0:1, :] += jnp.sum(preds * trues, axis=0, keepdims=True)
        out_ref[1:2, :] += jnp.sum(preds + trues, axis=0, keepdims=True)

    return kernel


def _row_spec(tile_r):
    return pl.BlockSpec((None, tile_r, 128), lambda n, r: (n, r, 0))


@functools.partial(jax.jit, static_argnames=("size_average",))
def dice_loss_forward(x, target, weight=None, size_average=True):
    """Pallas equivalent of DiceLoss.forward (returns 1 - dice score)."""
    n = x.shape[0]
    d = 1
    for s in x.shape[1:]:
        d *= s

    xf = x.reshape(n, d)
    tf = target.reshape(n, d)
    wf = weight.reshape(n, d) if weight is not None else None

    # Lane-pad only when D is not a multiple of 128 (pad values are irrelevant:
    # the in-kernel mask zeroes them).  Typical conv shapes hit the no-copy path.
    r_total = pl.cdiv(d, 128)
    d_pad = r_total * 128
    if d_pad != d:
        pad = ((0, 0), (0, d_pad - d))
        xf = jnp.pad(xf, pad)
        tf = jnp.pad(tf, pad)
        if wf is not None:
            wf = jnp.pad(wf, pad)

    x3 = xf.reshape(n, r_total, 128)
    t3 = tf.reshape(n, r_total, 128)
    w3 = wf.reshape(n, r_total, 128) if wf is not None else None

    # ~1 MiB sublane-full blocks (rows a multiple of 8), capped at the full sample.
    itemsize = jnp.dtype(x.dtype).itemsize
    max_rows = max(8, (1 << 20) // (128 * itemsize))
    tile_r = r_total if r_total <= max_rows else max_rows
    num_r = pl.cdiv(r_total, tile_r)
    need_mask = (d_pad != d) or (r_total % tile_r != 0)

    has_weight = w3 is not None
    kernel = _make_dice_kernel(has_weight, tile_r, d, need_mask)

    operands = [x3, t3] + ([w3] if has_weight else [])
    in_specs = [_row_spec(tile_r) for _ in operands]

    partials = pl.pallas_call(
        kernel,
        out_shape=jax.ShapeDtypeStruct((n, 2, 128), jnp.float32),
        grid=(n, num_r),
        in_specs=in_specs,
        out_specs=pl.BlockSpec((None, 2, 128), lambda i, r: (i, 0, 0)),
        compiler_params=pltpu.CompilerParams(
            dimension_semantics=("parallel", "arbitrary")
        ),
    )(*operands)

    inter = jnp.sum(partials[:, 0, :], axis=-1)
    denom = jnp.sum(partials[:, 1, :], axis=-1)
    scores = 2.0 * (inter + 1.0) / (denom + 1.0)

    if size_average:
        return 1.0 - jnp.clip(jnp.sum(scores) / n, 0.0, 1.0)
    return 1.0 - scores


def _reference(x, target, weight=None, size_average=True):
    """Pure-JAX reference mirroring the PyTorch code, for correctness check."""
    n = x.shape[0]
    preds = jax.nn.sigmoid(x.astype(jnp.float32)).reshape(n, -1)
    trues = target.astype(jnp.float32).reshape(n, -1)
    if weight is not None:
        w = weight.astype(jnp.float32).reshape(n, -1)
        preds = preds * w
        trues = trues * w
    inter = jnp.sum(preds * trues, axis=1)
    scores = 2.0 * (inter + 1.0) / (jnp.sum(preds, axis=1) + jnp.sum(trues, axis=1) + 1.0)
    if size_average:
        return 1.0 - jnp.clip(jnp.sum(scores) / n, 0.0, 1.0)
    return 1.0 - scores


if __name__ == "__main__":
    key = jax.random.PRNGKey(0)
    kx, kt, kw = jax.random.split(key, 3)

    N, C, H, W = 2, 4, 16, 16
    x = jax.random.normal(kx, (N, C, H, W), dtype=jnp.float32)
    target = jax.random.bernoulli(kt, 0.5, (N, C, H, W)).astype(jnp.float32)
    weight = jax.random.uniform(kw, (N, C, H, W), dtype=jnp.float32)

    # size_average=True, no weight (the default DiceLoss() path — 2-input kernel)
    loss = dice_loss_forward(x, target, weight=None, size_average=True)
    jax.block_until_ready(loss)
    ref = _reference(x, target, None, True)
    assert jnp.allclose(loss, ref, atol=1e-5, rtol=1e-5), (loss, ref)

    # size_average=False with weight (per-sample losses — 3-input kernel)
    loss_ns = dice_loss_forward(x, target, weight=weight, size_average=False)
    jax.block_until_ready(loss_ns)
    ref_ns = _reference(x, target, weight, False)
    assert jnp.allclose(loss_ns, ref_ns, atol=1e-5, rtol=1e-5), (loss_ns, ref_ns)

    print("KERNEL_OK")
</pallas_src>

<mosaic_0001>
module attributes {stable_mosaic.version = 11 : i64} {
  func.func @kernel(%arg0: i32, %arg1: i32, %arg2: memref<1x8x128xf32, #tpu.memory_space<vmem>>, %arg3: memref<1x8x128xf32, #tpu.memory_space<vmem>>, %arg4: memref<1x2x128xf32, #tpu.memory_space<vmem>>) attributes {dimension_semantics = [#tpu.dimension_semantics<parallel>, #tpu.dimension_semantics<arbitrary>], iteration_bounds = array<i64: 2, 1>, scalar_prefetch = 0 : i64, scratch_operands = 0 : i64, tpu.core_type = #tpu.core_type<tc>, window_params = [{transform_indices = @transform_0, window_bounds = array<i64: 1, 8, 128>}, {transform_indices = @transform_1, window_bounds = array<i64: 1, 8, 128>}, {transform_indices = @transform_2, window_bounds = array<i64: 1, 2, 128>}]} {
    %c0_i32 = arith.constant 0 : i32
    %0 = arith.cmpi eq, %arg1, %c0_i32 : i32
    %1 = arith.extui %0 : i1 to i32
    %c0_i32_0 = arith.constant 0 : i32
    %2 = arith.cmpi ne, %1, %c0_i32_0 : i32
    scf.if %2 {
      %cst_19 = arith.constant 0.000000e+00 : f32
      %30 = vector.broadcast %cst_19 : f32 to vector<2x128xf32>
      %c0_20 = arith.constant 0 : index
      %c0_21 = arith.constant 0 : index
      %c0_22 = arith.constant 0 : index
      %31 = vector.load %arg4[%c0_20, %c0_21, %c0_22] : memref<1x2x128xf32, #tpu.memory_space<vmem>>, vector<1x2x128xf32>
      %32 = vector.shape_cast %31 : vector<1x2x128xf32> to vector<2x128xf32>
      %33 = vector.shape_cast %30 : vector<2x128xf32> to vector<1x2x128xf32>
      tpu.vector_store %arg4[%c0_20, %c0_21, %c0_22], %33 {strides = array<i32>} : memref<1x2x128xf32, #tpu.memory_space<vmem>>, vector<1x2x128xf32>,
    } else {
    }
    %c0 = arith.constant 0 : index
    %c0_1 = arith.constant 0 : index
    %c0_2 = arith.constant 0 : index
    %3 = vector.load %arg2[%c0, %c0_1, %c0_2] : memref<1x8x128xf32, #tpu.memory_space<vmem>>, vector<1x8x128xf32>
    %4 = vector.shape_cast %3 : vector<1x8x128xf32> to vector<8x128xf32>
    %c0_3 = arith.constant 0 : index
    %c0_4 = arith.constant 0 : index
    %c0_5 = arith.constant 0 : index
    %5 = vector.load %arg3[%c0_3, %c0_4, %c0_5] : memref<1x8x128xf32, #tpu.memory_space<vmem>>, vector<1x8x128xf32>
    %6 = vector.shape_cast %5 : vector<1x8x128xf32> to vector<8x128xf32>
    %7 = arith.negf %4 : vector<8x128xf32>
    %8 = math.exp %7 : vector<8x128xf32>
    %cst = arith.constant 1.000000e+00 : f32
    %9 = vector.broadcast %cst : f32 to vector<8x128xf32>
    %10 = arith.addf %9, %8 : vector<8x128xf32>
    %11 = arith.divf %9, %10 : vector<8x128xf32>
    %c0_6 = arith.constant 0 : index
    %c0_7 = arith.constant 0 : index
    %c0_8 = arith.constant 0 : index
    %12 = vector.load %arg4[%c0_6, %c0_7, %c0_8] : memref<1x2x128xf32, #tpu.memory_space<vmem>>, vector<1x1x128xf32>
    %13 = vector.shape_cast %12 : vector<1x1x128xf32> to vector<1x128xf32>
    %14 = arith.mulf %11, %6 : vector<8x128xf32>
    %cst_9 = arith.constant dense<0.000000e+00> : vector<128xf32>
    %15 = vector.multi_reduction <add>, %14, %cst_9 [0] : vector<8x128xf32> to vector<128xf32>
    %16 = vector.shape_cast %15 : vector<128xf32> to vector<1x128xf32>
    %17 = arith.addf %13, %16 : vector<1x128xf32>
    %c0_10 = arith.constant 0 : index
    %c0_11 = arith.constant 0 : index
    %c0_12 = arith.constant 0 : index
    %18 = vector.load %arg4[%c0_10, %c0_11, %c0_12] : memref<1x2x128xf32, #tpu.memory_space<vmem>>, vector<1x1x128xf32>
    %19 = vector.shape_cast %18 : vector<1x1x128xf32> to vector<1x128xf32>
    %20 = vector.shape_cast %17 : vector<1x128xf32> to vector<1x1x128xf32>
    tpu.vector_store %arg4[%c0_10, %c0_11, %c0_12], %20 {strides = array<i32>} : memref<1x2x128xf32, #tpu.memory_space<vmem>>, vector<1x1x128xf32>,
    %c0_13 = arith.constant 0 : index
    %c1 = arith.constant 1 : index
    %c0_14 = arith.constant 0 : index
    %21 = vector.load %arg4[%c0_13, %c1, %c0_14] : memref<1x2x128xf32, #tpu.memory_space<vmem>>, vector<1x1x128xf32>
    %22 = vector.shape_cast %21 : vector<1x1x128xf32> to vector<1x128xf32>
    %23 = arith.addf %11, %6 : vector<8x128xf32>
    %cst_15 = arith.constant dense<0.000000e+00> : vector<128xf32>
    %24 = vector.multi_reduction <add>, %23, %cst_15 [0] : vector<8x128xf32> to vector<128xf32>
    %25 = vector.shape_cast %24 : vector<128xf32> to vector<1x128xf32>
    %26 = arith.addf %22, %25 : vector<1x128xf32>
    %c0_16 = arith.constant 0 : index
    %c1_17 = arith.constant 1 : index
    %c0_18 = arith.constant 0 : index
    %27 = vector.load %arg4[%c0_16, %c1_17, %c0_18] : memref<1x2x128xf32, #tpu.memory_space<vmem>>, vector<1x1x128xf32>
    %28 = vector.shape_cast %27 : vector<1x1x128xf32> to vector<1x128xf32>
    %29 = vector.shape_cast %26 : vector<1x128xf32> to vector<1x1x128xf32>
    tpu.vector_store %arg4[%c0_16, %c1_17, %c0_18], %29 {strides = array<i32>} : memref<1x2x128xf32, #tpu.memory_space<vmem>>, vector<1x1x128xf32>,
    return
  }
  func.func @transform_0(%arg0: i32, %arg1: i32) -> (i32, i32, i32) {
    %c0_i32 = arith.constant 0 : i32
    %c0_i32_0 = arith.constant 0 : i32
    return %arg0, %arg1, %c0_i32 : i32, i32, i32
  }
  func.func @transform_1(%arg0: i32, %arg1: i32) -> (i32, i32, i32) {
    %c0_i32 = arith.constant 0 : i32
    %c0_i32_0 = arith.constant 0 : i32
    return %arg0, %arg1, %c0_i32 : i32, i32, i32
  }
  func.func @transform_2(%arg0: i32, %arg1: i32) -> (i32, i32, i32) {
    %c0_i32 = arith.constant 0 : i32
    %c0_i32_0 = arith.constant 0 : i32
    %c0_i32_1 = arith.constant 0 : i32
    return %arg0, %c0_i32, %c0_i32_0 : i32, i32, i32
  }
}

</mosaic_0001>

<llo_original>
// kernel: dice_loss_forward.1
$region0: #{dice_loss_forward.1}
  #allocation0 [shape = 'u32[]', space=smem, size = 0x4, offset = 0x4, fixed_abs, tag = 'smem constant byte address 0x4 - core index']
  #allocation1 [shape = 'u32[144,128]{1,0:T(1,128)}', space=vmem, size = 0x12000, scoped, tag = 'internal scratch']
  %s0 = inlined_call_operand.vmem [shape: f32[2,8,128], index: 0, kind: input, shape index: {}]
  %s1 = inlined_call_operand.vmem [shape: f32[2,8,128], index: 1, kind: input, shape index: {}]
  %s2 = inlined_call_operand.vmem [shape: f32[2,2,128], index: 2, kind: output, shape index: {}]
  %s3 = sld [smem:[#allocation0]]
  $region45: #{dice_loss_forward.1} parent=0
    _
  %s5 = ssub.s32 1, %s3
  %s6 = scalar_select 0, %s5, %s3
  loop: start=0, step=1, limit=4
  $region2: #{dice_loss_forward.1} parent=0 // loop_pre_header
    _
  $region3: #{dice_loss_forward.1} parent=0 // loop_header
    %s8 = sphi 0, %s12
    %p9 = scmp.ge.s32.totalorder %s8, 4
    %s15 = sphi 0, %s27
    %s16 = sphi 0, %s23
    %s17 = sphi 0, %s15
    %s18 = sphi 0, %s16
    %s19 = sphi 0, %s17
    %s20 = sphi 0, %s18
    %s32 = sphi 0, %s34
    %s35 = sphi 0, %s32
    %s36 = sphi 0, %s35
    %s52 = sphi 0, %s36
    %s60 = sphi 0, %s62
    %s63 = sphi 0, %s60
    %s64 = sphi 0, %s63
    %s80 = sphi 0, %s64
    %s86 = sphi 0, %s88
    %s89 = sphi 0, %s86
    %s90 = sphi 0, %s89
    %s106 = sphi 0, %s90
  $region4: #{dice_loss_forward.1} parent=0 // loop_header_branch
    %11 = sbr.rel (%p9) target = $region8
  $region5: #{dice_loss_forward.1} parent=0 // loop_body
    %s13 = ssub.s32 %s8, 1
    %s14 = ssub.s32 %s8, 2
    %s21 = sadd.s32 1, %s16
    %p22 = scmp.ge.s32.totalorder %s21, 1
    %s23 = scalar_select %p22, 0, %s21
    %s24 = sadd.s32 1, %s15
    %s25 = scalar_select %p22, %s24, %s15
    %p26 = scmp.ge.s32.totalorder %s25, 2
    %s27 = scalar_select %p26, 0, %s25
    %s28 = ssub.s32 %s15, %s27
    %s29 = ssub.s32 %s16, %s23
    %s30 = sor.u32 %s28, %s29
    %p31 = scmp.eq.s32.totalorder %s30, 0
    %s33 = sadd.s32 %s32, 1
    %s34 = scalar_select %p31, %s32, %s33
    %p37 = pneg %p31
    %p38 = scmp.eq.s32.totalorder %s8, 1
    %p39 = por %p37, %p38
    %p40 = scmp.ne.s32.totalorder %s32, %s35
    %p41 = scmp.eq.s32.totalorder %s8, 0
    %p42 = por %p40, %p41
    %p43 = scmp.ne.s32.totalorder %s32, %s35
    %p44 = scmp.eq.s32.totalorder %s13, 1
    %p45 = por %p43, %p44
    %p46 = scmp.ne.s32.totalorder %s35, %s36
    %p47 = scmp.eq.s32.totalorder %s13, 0
    %p48 = por %p46, %p47
    %p49 = scmp.ne.s32.totalorder %s35, %s36
    %p50 = scmp.eq.s32.totalorder %s14, 1
    %p51 = por %p49, %p50
    %p53 = scmp.ne.s32.totalorder %s36, %s52
    %p54 = scmp.eq.s32.totalorder %s14, 0
    %p55 = por %p53, %p54
    %s56 = ssub.s32 %s15, %s27
    %s57 = ssub.s32 %s16, %s23
    %s58 = sor.u32 %s56, %s57
    %p59 = scmp.eq.s32.totalorder %s58, 0
    %s61 = sadd.s32 %s60, 1
    %s62 = scalar_select %p59, %s60, %s61
    %p65 = pneg %p59
    %p66 = scmp.eq.s32.totalorder %s8, 1
    %p67 = por %p65, %p66
    %p68 = scmp.ne.s32.totalorder %s60, %s63
    %p69 = scmp.eq.s32.totalorder %s8, 0
    %p70 = por %p68, %p69
    %p71 = scmp.ne.s32.totalorder %s60, %s63
    %p72 = scmp.eq.s32.totalorder %s13, 1
    %p73 = por %p71, %p72
    %p74 = scmp.ne.s32.totalorder %s63, %s64
    %p75 = scmp.eq.s32.totalorder %s13, 0
    %p76 = por %p74, %p75
    %p77 = scmp.ne.s32.totalorder %s63, %s64
    %p78 = scmp.eq.s32.totalorder %s14, 1
    %p79 = por %p77, %p78
    %p81 = scmp.ne.s32.totalorder %s64, %s80
    %p82 = scmp.eq.s32.totalorder %s14, 0
    %p83 = por %p81, %p82
    %s84 = ssub.s32 %s15, %s27
    %p85 = scmp.eq.s32.totalorder %s84, 0
    %s87 = sadd.s32 %s86, 1
    %s88 = scalar_select %p85, %s86, %s87
    %p91 = pneg %p85
    %p92 = scmp.eq.s32.totalorder %s8, 1
    %p93 = por %p91, %p92
    %p94 = scmp.ne.s32.totalorder %s86, %s89
    %p95 = scmp.eq.s32.totalorder %s8, 0
    %p96 = por %p94, %p95
    %p97 = scmp.ne.s32.totalorder %s86, %s89
    %p98 = scmp.eq.s32.totalorder %s13, 1
    %p99 = por %p97, %p98
    %p100 = scmp.ne.s32.totalorder %s89, %s90
    %p101 = scmp.eq.s32.totalorder %s13, 0
    %p102 = por %p100, %p101
    %p103 = scmp.ne.s32.totalorder %s89, %s90
    %p104 = scmp.eq.s32.totalorder %s14, 1
    %p105 = por %p103, %p104
    %p107 = scmp.ne.s32.totalorder %s90, %s106
    %p108 = scmp.eq.s32.totalorder %s14, 0
    %p109 = por %p107, %p108
    %p110 = scmp.le.s32.totalorder 1, %s8
    %p111 = scmp.lt.s32.totalorder %s8, 3
    %p112 = pnand %p110, %p111
    %p113 = pneg %p112
    // Predicated region
    $region9: #{dice_loss_forward.1} parent=5 // pred_check
      _
    $region10: #{dice_loss_forward.1} parent=5 // pred_check_branch
      %115 = sbr.rel (%p112) target = $region12
    $region11: #{dice_loss_forward.1} parent=5 // pred_region
      %s116 = ssub.s32 %s8, 1
    $region12: #{dice_loss_forward.1} parent=5 // pred_fallthru
      _
    %p117 = scmp.lt.s32.totalorder %s8, 2
    // Predicated region
    $region13: #{dice_loss_forward.1} parent=5 // pred_check
      %p118 = pneg %p117
    $region14: #{dice_loss_forward.1} parent=5 // pred_check_branch
      %120 = sbr.rel (%p118) target = $region16
    $region15: #{dice_loss_forward.1} parent=5 // pred_region
      // Predicated region
      $region17: #{dice_loss_forward.1} parent=15 // pred_check
        %p121 = pneg %p42
      $region18: #{dice_loss_forward.1} parent=15 // pred_check_branch
        %123 = sbr.rel (%p121) target = $region20
      $region19: #{dice_loss_forward.1} parent=15 // pred_region
        %p124 = scmp.lt.s32.totalorder %s15, 1
        %s125 = scalar_select %p124, %s15, 1
        %p126 = scmp.lt.s32.totalorder %s16, 0
        %s127 = scalar_select %p126, %s16, 0
        %s128 = sadd.s32 %s127, %s125
        %s129 = smul.addr %s128, 8
        %s130 = scalar_lea.vmem %s0, %s129
      $region20: #{dice_loss_forward.1} parent=15 // pred_fallthru
        _
      // Predicated region
      $region21: #{dice_loss_forward.1} parent=15 // pred_check
        %p131 = pneg %p70
      $region22: #{dice_loss_forward.1} parent=15 // pred_check_branch
        %133 = sbr.rel (%p131) target = $region24
      $region23: #{dice_loss_forward.1} parent=15 // pred_region
        %p134 = scmp.lt.s32.totalorder %s15, 1
        %s135 = scalar_select %p134, %s15, 1
        %p136 = scmp.lt.s32.totalorder %s16, 0
        %s137 = scalar_select %p136, %s16, 0
        %s138 = sadd.s32 %s137, %s135
        %s139 = smul.addr %s138, 8
        %s140 = scalar_lea.vmem %s1, %s139
      $region24: #{dice_loss_forward.1} parent=15 // pred_fallthru
        _
    $region16: #{dice_loss_forward.1} parent=5 // pred_fallthru
      _
    %p141 = scmp.le.s32.totalorder 1, %s8
    %p142 = scmp.lt.s32.totalorder %s8, 3
    %p143 = pnand %p141, %p142
    %p144 = pneg %p143
    // Predicated region
    $region25: #{dice_loss_forward.1} parent=5 // pred_check
      _
    $region26: #{dice_loss_forward.1} parent=5 // pred_check_branch
      %146 = sbr.rel (%p143) target = $region28
    $region27: #{dice_loss_forward.1} parent=5 // pred_region
      %s147 = ssub.s32 %s8, 1
      %p148 = scmp.lt.s32.totalorder %s17, 1
      %s149 = scalar_select %p148, %s17, 1
      %p150 = scmp.lt.s32.totalorder %s18, 0
      %s151 = scalar_select %p150, %s18, 0
      %s152 = sadd.s32 %s151, %s149
      %s153 = smul.addr %s152, 8
      %s154 = scalar_lea.vmem %s0, %s153
      %p155 = pneg %p48
      %p156 = pneg %p45
      %p157 = scmp.lt.s32.totalorder %s17, 1
      %s158 = scalar_select %p157, %s17, 1
      %p159 = scmp.lt.s32.totalorder %s18, 0
      %s160 = scalar_select %p159, %s18, 0
      %s161 = sadd.s32 %s160, %s158
      %s162 = smul.addr %s161, 8
      %s163 = scalar_lea.vmem %s1, %s162
      %p164 = pneg %p76
      %p165 = pneg %p73
      %p166 = pneg %p102
      %p167 = pneg %p99
      %p168 = scmp.lt.s32.totalorder %s17, 1
      %s169 = scalar_select %p168, %s17, 1
      %s170 = smul.addr %s169, 2
      %s171 = scalar_lea.vmem %s2, %s170
      %p172 = scmp.lt.s32.totalorder %s17, 1
      %s173 = scalar_select %p172, %s17, 1
      %p174 = scmp.lt.s32.totalorder %s18, 0
      %s175 = scalar_select %p174, %s18, 0
      %s176 = sadd.s32 %s175, %s173
      %s177 = smul.addr %s176, 8
      %s178 = scalar_lea.vmem %s0, %s177
      %p179 = scmp.lt.s32.totalorder %s17, 1
      %s180 = scalar_select %p179, %s17, 1
      %p181 = scmp.lt.s32.totalorder %s18, 0
      %s182 = scalar_select %p181, %s18, 0
      %s183 = sadd.s32 %s182, %s180
      %s184 = smul.addr %s183, 8
      %s185 = scalar_lea.vmem %s1, %s184
      %p186 = scmp.lt.s32.totalorder %s17, 1
      %s187 = scalar_select %p186, %s17, 1
      %s188 = smul.addr %s187, 2
      %s189 = scalar_lea.vmem %s2, %s188
      %p190 = scmp.eq.s32.totalorder %s18, 0
      // Predicated region
      $region29: #{dice_loss_forward.1} parent=27 // pred_check
        %p191 = pneg %p190
      $region30: #{dice_loss_forward.1} parent=27 // pred_check_branch
        %193 = sbr.rel (%p191) target = $region32
      $region31: #{dice_loss_forward.1} parent=27 // pred_region
        %194 = vst [vmem:[%s189] sm:$0x3] 0.0
      $region32: #{dice_loss_forward.1} parent=27 // pred_fallthru
        _
      %v195 = vld [vmem:[%s178] sm:$0xff]
      %v196 = vld [vmem:[%s185] sm:$0xff]
      %v197 = vxor.u32 %v195, 2147483648
      %v198 = vmul.f32 %v197, 1.442695
      %v199 = vpow.pop %v198
      %v200 = vadd.f32 %v199, 1.0
      %v201 = vrcp.pop %v200
      %v202 = vmul.f32 1.0, %v201
      %v203 = vld [vmem:[%s189] sm:$0x1]
      %v204 = vmul.f32 %v202, %v196
      %v205 = vrot.slane %v204, 4
      %v206 = vadd.f32 %v204, %v205
      %v207 = vrot.slane %v206, 2
      %v208 = vadd.f32 %v206, %v207
      %v209 = vrot.slane %v208, 1
      %v210 = vadd.f32 %v208, %v209
      %v211 = vadd.f32 %v203, %v210
      %212 = vst [vmem:[%s189] sm:$0x1] %v211
      %v213 = vld [vmem:[%s189 + $0x1] sm:$0x1]
      %v214 = vadd.f32 %v202, %v196
      %v215 = vrot.slane %v214, 4
      %v216 = vadd.f32 %v214, %v215
      %v217 = vrot.slane %v216, 2
      %v218 = vadd.f32 %v216, %v217
      %v219 = vrot.slane %v218, 1
      %v220 = vadd.f32 %v218, %v219
      %v221 = vadd.f32 %v213, %v220
      %222 = vst [vmem:[%s189 + $0x1] sm:$0x1] %v221
      %p223 = scmp.lt.s32.totalorder %s17, 1
      %s224 = scalar_select %p223, %s17, 1
      %s225 = smul.addr %s224, 2
      %s226 = scalar_lea.vmem %s2, %s225
      // Predicated region
      $region33: #{dice_loss_forward.1} parent=27 // pred_check
        %p227 = pneg %p99
      $region34: #{dice_loss_forward.1} parent=27 // pred_check_branch
        %229 = sbr.rel (%p227) target = $region36
      $region35: #{dice_loss_forward.1} parent=27 // pred_region
        _
      $region36: #{dice_loss_forward.1} parent=27 // pred_fallthru
        _
    $region28: #{dice_loss_forward.1} parent=5 // pred_fallthru
      _
    %p230 = scmp.le.s32.totalorder 2, %s8
    // Predicated region
    $region37: #{dice_loss_forward.1} parent=5 // pred_check
      %p231 = pneg %p230
    $region38: #{dice_loss_forward.1} parent=5 // pred_check_branch
      %233 = sbr.rel (%p231) target = $region40
    $region39: #{dice_loss_forward.1} parent=5 // pred_region
      %s234 = ssub.s32 %s8, 2
      // Predicated region
      $region41: #{dice_loss_forward.1} parent=39 // pred_check
        %p235 = pneg %p105
      $region42: #{dice_loss_forward.1} parent=39 // pred_check_branch
        %237 = sbr.rel (%p235) target = $region44
      $region43: #{dice_loss_forward.1} parent=39 // pred_region
        %p238 = scmp.lt.s32.totalorder %s19, 1
        %s239 = scalar_select %p238, %s19, 1
        %s240 = smul.addr %s239, 2
        %s241 = scalar_lea.vmem %s2, %s240
      $region44: #{dice_loss_forward.1} parent=39 // pred_fallthru
        _
    $region40: #{dice_loss_forward.1} parent=5 // pred_fallthru
      _
  $region6: #{dice_loss_forward.1} parent=0 // loop_footer
    %s12 = sadd.s32 1, %s8
  $region7: #{dice_loss_forward.1} parent=0 // loop_footer_branch
    %7 = sbr.rel target = $region3
  $region8: #{dice_loss_forward.1} parent=0 // loop_exit
    _

</llo_original>
